<compile_context>
chip_gen: v7x
topology: tpu7x:2x2x1
jax: 0.10.0
libtpu: 0.0.40
codegen_flags: <defaults>
</compile_context>

<pallas_src>
import jax
import jax.numpy as jnp
from jax.experimental import pallas as pl
from jax.experimental.pallas import tpu as pltpu

LANE = 128  # TPU lane width: feature dims are padded to this once, at init.


def snake_ai_kernel(x_ref, w1_ref, b1_ref, w2_ref, b2_ref, o_ref):
    # Hidden layer: (Bb, IN) @ (IN, HID_PAD) -> (Bb, HID_PAD), + bias, ReLU.
    h = jnp.dot(x_ref[...], w1_ref[...], preferred_element_type=jnp.float32)
    h = jnp.maximum(h + b1_ref[...], 0.0)          # (Bb,H)+(1,H) broadcast, VPU
    # Output layer: lane-dense compute in VMEM, (Bb, HID_PAD) @ (HID_PAD, OUT_PAD).
    y = jnp.dot(h, w2_ref[...], preferred_element_type=jnp.float32) + b2_ref[...]
    # Store only the valid output columns (narrow, masked vst; tiny HBM write).
    o_ref[...] = y[:, : o_ref.shape[-1]].astype(o_ref.dtype)


def _round_up(n, m):
    return ((n + m - 1) // m) * m


def prepare_params(w1, b1, w2, b2):
    """One-time (init-time) repack of PyTorch-layout Linear params.

    w1: (hidden, input), b1: (hidden,), w2: (output, hidden), b2: (output,)
    Returns padded, (in,out)-layout params ready for the kernel so the per-call
    wrapper does NO transposes/reshapes.
    """
    hidden_size, input_size = w1.shape
    output_size = w2.shape[0]
    hid_pad = _round_up(hidden_size, LANE)
    out_pad = _round_up(output_size, LANE)

    w1_p = jnp.zeros((input_size, hid_pad), jnp.float32)
    w1_p = w1_p.at[:, :hidden_size].set(jnp.transpose(w1))
    b1_p = jnp.zeros((1, hid_pad), jnp.float32).at[:, :hidden_size].set(b1)

    w2_p = jnp.zeros((hid_pad, out_pad), jnp.float32)
    w2_p = w2_p.at[:hidden_size, :output_size].set(jnp.transpose(w2))
    b2_p = jnp.zeros((1, out_pad), jnp.float32).at[:, :output_size].set(b2)

    return {
        "w1": w1_p, "b1": b1_p, "w2": w2_p, "b2": b2_p,
        "output_size": output_size,
    }


def snake_ai_forward(x, params, *, block_b=4096):
    """Pallas-fused SnakeAI forward.

    Args:
      x:      (B, input_size) float32
      params: dict from prepare_params()
    Returns:
      (B, output_size) float32
    """
    w1_p, b1_p, w2_p, b2_p = params["w1"], params["b1"], params["w2"], params["b2"]
    output_size = params["output_size"]
    B, input_size = x.shape
    hid_pad = w1_p.shape[1]
    out_pad = w2_p.shape[1]

    if B <= 512:
        # Single block: minimum grid overhead / latency for small batches.
        bb = B
    else:
        # >= 2 blocks so the "parallel" batch axis can shard across both
        # TensorCores on v7x; cap at block_b to bound the VMEM footprint.
        bb = min(block_b, _round_up((B + 1) // 2, 8))
    grid = (pl.cdiv(B, bb),)

    cost = pl.CostEstimate(
        flops=2 * B * (input_size * hid_pad + hid_pad * out_pad),
        transcendentals=0,
        bytes_accessed=4 * (x.size + w1_p.size + b1_p.size + w2_p.size
                            + b2_p.size + B * output_size),
    )

    # NOTE: jnp.dot uses default (bf16-pass) MXU precision, same as the pure
    # JAX reference below; pass precision=jax.lax.Precision.HIGHEST if exact
    # fp32 PyTorch parity is ever required (cost is negligible at these shapes).
    return pl.pallas_call(
        snake_ai_kernel,
        out_shape=jax.ShapeDtypeStruct((B, output_size), jnp.float32),
        grid_spec=pltpu.PrefetchScalarGridSpec(
            num_scalar_prefetch=0,
            grid=grid,
            in_specs=[
                pl.BlockSpec((bb, input_size), lambda i: (i, 0)),       # x
                pl.BlockSpec((input_size, hid_pad), lambda i: (0, 0)),  # w1 (resident)
                pl.BlockSpec((1, hid_pad), lambda i: (0, 0)),           # b1 (resident)
                pl.BlockSpec((hid_pad, out_pad), lambda i: (0, 0)),     # w2 (resident)
                pl.BlockSpec((1, out_pad), lambda i: (0, 0)),           # b2 (resident)
            ],
            out_specs=pl.BlockSpec((bb, output_size), lambda i: (i, 0)),
        ),
        compiler_params=pltpu.CompilerParams(
            dimension_semantics=("parallel",)),
        cost_estimate=cost,
    )(x, w1_p, b1_p, w2_p, b2_p)


def _init_linear(key, out_features, in_features):
    """Deterministic PyTorch-style Linear init: U(-1/sqrt(in), 1/sqrt(in))."""
    kw, kb = jax.random.split(key)
    bound = 1.0 / jnp.sqrt(jnp.float32(in_features))
    w = jax.random.uniform(kw, (out_features, in_features), jnp.float32,
                           minval=-bound, maxval=bound)
    b = jax.random.uniform(kb, (out_features,), jnp.float32,
                           minval=-bound, maxval=bound)
    return w, b


if __name__ == "__main__":
    # Small shapes consistent with the DQL-Snake model (state -> hidden -> actions).
    batch = 8
    input_size = 11
    hidden_size = 32
    output_size = 3

    key = jax.random.PRNGKey(0)
    kx, k1, k2, kx2 = jax.random.split(key, 4)

    x = jax.random.normal(kx, (batch, input_size), jnp.float32)
    w1, b1 = _init_linear(k1, hidden_size, input_size)
    w2, b2 = _init_linear(k2, output_size, hidden_size)

    # One-time parameter repack (kept out of the per-call hot path).
    params = prepare_params(w1, b1, w2, b2)

    # Small-batch (single block) path.
    out = snake_ai_forward(x, params)
    out = jax.block_until_ready(out)
    ref = jnp.maximum(x @ w1.T + b1, 0.0) @ w2.T + b2
    assert out.shape == (batch, output_size)
    assert jnp.allclose(out, ref, atol=1e-5, rtol=1e-5)

    # Larger batch exercises the multi-block "parallel" grid (2 blocks -> both
    # TensorCores on v7x).
    big_b = 640
    x_big = jax.random.normal(kx2, (big_b, input_size), jnp.float32)
    out_big = jax.block_until_ready(snake_ai_forward(x_big, params))
    ref_big = jnp.maximum(x_big @ w1.T + b1, 0.0) @ w2.T + b2
    assert out_big.shape == (big_b, output_size)
    assert jnp.allclose(out_big, ref_big, atol=1e-5, rtol=1e-5)

    print("KERNEL_OK")
</pallas_src>

<mosaic_0001>
module attributes {stable_mosaic.version = 11 : i64} {
  func.func @snake_ai_kernel(%arg0: i32, %arg1: memref<8x11xf32, #tpu.memory_space<vmem>>, %arg2: memref<11x128xf32, #tpu.memory_space<vmem>>, %arg3: memref<1x128xf32, #tpu.memory_space<vmem>>, %arg4: memref<128x128xf32, #tpu.memory_space<vmem>>, %arg5: memref<1x128xf32, #tpu.memory_space<vmem>>, %arg6: memref<8x3xf32, #tpu.memory_space<vmem>>) attributes {dimension_semantics = [#tpu.dimension_semantics<parallel>], iteration_bounds = array<i64: 1>, scalar_prefetch = 0 : i64, scratch_operands = 0 : i64, tpu.core_type = #tpu.core_type<tc>, window_params = [{transform_indices = @transform_0, window_bounds = array<i64: 8, 11>}, {pipeline_mode = #tpu.pipeline_mode<synchronous>, transform_indices = @transform_1, window_bounds = array<i64: 11, 128>}, {pipeline_mode = #tpu.pipeline_mode<synchronous>, transform_indices = @transform_2, window_bounds = array<i64: 1, 128>}, {pipeline_mode = #tpu.pipeline_mode<synchronous>, transform_indices = @transform_3, window_bounds = array<i64: 128, 128>}, {pipeline_mode = #tpu.pipeline_mode<synchronous>, transform_indices = @transform_4, window_bounds = array<i64: 1, 128>}, {transform_indices = @transform_5, window_bounds = array<i64: 8, 3>}]} {
    %c0 = arith.constant 0 : index
    %c0_0 = arith.constant 0 : index
    %0 = vector.load %arg1[%c0, %c0_0] : memref<8x11xf32, #tpu.memory_space<vmem>>, vector<8x11xf32>
    %c0_1 = arith.constant 0 : index
    %c0_2 = arith.constant 0 : index
    %1 = vector.load %arg2[%c0_1, %c0_2] : memref<11x128xf32, #tpu.memory_space<vmem>>, vector<11x128xf32>
    %cst = arith.constant dense<0.000000e+00> : vector<8x128xf32>
    %2 = tpu.matmul %0, %1, %cst {dimension_numbers = #tpu.dot_dimension_numbers<[1], [0], [0], [1], [0, 0, 1, 1], [], []>} : vector<8x11xf32>, vector<11x128xf32>, vector<8x128xf32> -> vector<8x128xf32>
    %c0_3 = arith.constant 0 : index
    %c0_4 = arith.constant 0 : index
    %3 = vector.load %arg3[%c0_3, %c0_4] : memref<1x128xf32, #tpu.memory_space<vmem>>, vector<1x128xf32>
    %4 = vector.broadcast %3 : vector<1x128xf32> to vector<8x128xf32>
    %5 = arith.addf %2, %4 : vector<8x128xf32>
    %cst_5 = arith.constant 0.000000e+00 : f32
    %6 = vector.broadcast %cst_5 : f32 to vector<8x128xf32>
    %7 = arith.maximumf %5, %6 : vector<8x128xf32>
    %c0_6 = arith.constant 0 : index
    %c0_7 = arith.constant 0 : index
    %8 = vector.load %arg4[%c0_6, %c0_7] : memref<128x128xf32, #tpu.memory_space<vmem>>, vector<128x128xf32>
    %cst_8 = arith.constant dense<0.000000e+00> : vector<8x128xf32>
    %9 = tpu.matmul %7, %8, %cst_8 {dimension_numbers = #tpu.dot_dimension_numbers<[1], [0], [0], [1], [0, 0, 1, 1], [], []>} : vector<8x128xf32>, vector<128x128xf32>, vector<8x128xf32> -> vector<8x128xf32>
    %c0_9 = arith.constant 0 : index
    %c0_10 = arith.constant 0 : index
    %10 = vector.load %arg5[%c0_9, %c0_10] : memref<1x128xf32, #tpu.memory_space<vmem>>, vector<1x128xf32>
    %11 = vector.broadcast %10 : vector<1x128xf32> to vector<8x128xf32>
    %12 = arith.addf %9, %11 : vector<8x128xf32>
    %13 = vector.extract_strided_slice %12 {offsets = [0, 0], sizes = [8, 3], strides = [1, 1]} : vector<8x128xf32> to vector<8x3xf32>
    %c0_11 = arith.constant 0 : index
    %c0_12 = arith.constant 0 : index
    %14 = vector.load %arg6[%c0_11, %c0_12] : memref<8x3xf32, #tpu.memory_space<vmem>>, vector<8x3xf32>
    tpu.vector_store %arg6[%c0_11, %c0_12], %13 {strides = array<i32>} : memref<8x3xf32, #tpu.memory_space<vmem>>, vector<8x3xf32>,
    return
  }
  func.func @transform_0(%arg0: i32) -> (i32, i32) {
    %c0_i32 = arith.constant 0 : i32
    %c0_i32_0 = arith.constant 0 : i32
    return %arg0, %c0_i32 : i32, i32
  }
  func.func @transform_1(%arg0: i32) -> (i32, i32) {
    %c0_i32 = arith.constant 0 : i32
    %c0_i32_0 = arith.constant 0 : i32
    %c0_i32_1 = arith.constant 0 : i32
    return %c0_i32, %c0_i32_0 : i32, i32
  }
  func.func @transform_2(%arg0: i32) -> (i32, i32) {
    %c0_i32 = arith.constant 0 : i32
    %c0_i32_0 = arith.constant 0 : i32
    %c0_i32_1 = arith.constant 0 : i32
    return %c0_i32, %c0_i32_0 : i32, i32
  }
  func.func @transform_3(%arg0: i32) -> (i32, i32) {
    %c0_i32 = arith.constant 0 : i32
    %c0_i32_0 = arith.constant 0 : i32
    %c0_i32_1 = arith.constant 0 : i32
    return %c0_i32, %c0_i32_0 : i32, i32
  }
  func.func @transform_4(%arg0: i32) -> (i32, i32) {
    %c0_i32 = arith.constant 0 : i32
    %c0_i32_0 = arith.constant 0 : i32
    %c0_i32_1 = arith.constant 0 : i32
    return %c0_i32, %c0_i32_0 : i32, i32
  }
  func.func @transform_5(%arg0: i32) -> (i32, i32) {
    %c0_i32 = arith.constant 0 : i32
    %c0_i32_0 = arith.constant 0 : i32
    return %arg0, %c0_i32 : i32, i32
  }
}

</mosaic_0001>

<llo_original>
// kernel: tpu_custom_call.1
$region0: #{tpu_custom_call.1}
  #allocation0 [shape = 'u32[]', space=smem, size = 0x4, offset = 0x4, fixed_abs, tag = 'smem constant byte address 0x4 - core index']
  #allocation1 [shape = 'u32[144,128]{1,0:T(1,128)}', space=vmem, size = 0x12000, scoped, tag = 'internal scratch']
  %s0 = inlined_call_operand.hbm [shape: f32[8,11], index: 0, kind: input, shape index: {}]
  %s1 = inlined_call_operand.hbm [shape: f32[11,128], index: 1, kind: input, shape index: {}]
  %s2 = inlined_call_operand.vmem [shape: f32[1,128], index: 2, kind: input, shape index: {}]
  %s3 = inlined_call_operand.hbm [shape: f32[128,128], index: 3, kind: input, shape index: {}]
  %s4 = inlined_call_operand.vmem [shape: f32[1,128], index: 4, kind: input, shape index: {}]
  %s5 = inlined_call_operand.vmem [shape: f32[8,3], index: 5, kind: output, shape index: {}]
  %s6 = sld [smem:[#allocation0]]
  $region42: #{tpu_custom_call.1} parent=0
    _
  %s8 = ssub.s32 1, %s6
  %s9 = scalar_select 0, %s8, %s6
  $region1: #{tpu_custom_call.1} parent=0
    #allocation2 [shape = 'u8[4096]{0}', space=vmem, size = 0x1000, scoped, tag = 'input window, operand 0, single buffered']
    #allocation3 [shape = 's32[1]{0}', space=sflag, size = 0x4, scoped, tag = 'scoped memory for tpu_custom_call.1']
    #allocation4 [shape = 'u8[8192]{0}', space=vmem, size = 0x2000, scoped, tag = 'input window, operand 1, single buffered']
    #allocation5 [shape = 's32[1]{0}', space=sflag, size = 0x4, scoped, tag = 'scoped memory for tpu_custom_call.1']
    #allocation6 [shape = 'u8[65536]{0}', space=vmem, size = 0x10000, scoped, tag = 'input window, operand 3, single buffered']
    %10 = vsyncpa [#allocation3], 0
    %11 = vsyncpa [#allocation5], 0
    // Predicated region
    $region2: #{tpu_custom_call.1} parent=1 // pred_check
      _
    $region3: #{tpu_custom_call.1} parent=1 // pred_check_branch
      %13 = sbr.rel (0) target = $region5
    $region4: #{tpu_custom_call.1} parent=1 // pred_region
      %s15 = ssub.s32 128, 128
      %16 = vsyncadd [#allocation3], %s15
      %s18 = sshll.u32 [#allocation2], 4
      %s19 = int_to_ptr.vmem [resolvable:$true] %s18
      %21 = dma.hbm_to_vmem [thread:$0]  %s0, 128, %s19, [#allocation3]
    $region5: #{tpu_custom_call.1} parent=1 // pred_fallthru
      _
    // Predicated region
    $region6: #{tpu_custom_call.1} parent=1 // pred_check
      _
    $region7: #{tpu_custom_call.1} parent=1 // pred_check_branch
      %23 = sbr.rel (0) target = $region9
    $region8: #{tpu_custom_call.1} parent=1 // pred_region
      %s25 = ssub.s32 256, 256
      %26 = vsyncadd [#allocation5], %s25
      %s27 = sshll.u32 [#allocation4], 4
      %s28 = int_to_ptr.vmem [resolvable:$true] %s27
      %33 = dma.hbm_to_vmem [thread:$0]  %s1, 256, %s28, [#allocation5], 128, 128, 8
    $region9: #{tpu_custom_call.1} parent=1 // pred_fallthru
      _
    // Predicated region
    $region10: #{tpu_custom_call.1} parent=1 // pred_check
      _
    $region11: #{tpu_custom_call.1} parent=1 // pred_check_branch
      %35 = sbr.rel (0) target = $region13
    $region12: #{tpu_custom_call.1} parent=1 // pred_region
      _
    $region13: #{tpu_custom_call.1} parent=1 // pred_fallthru
      _
    // Predicated region
    $region14: #{tpu_custom_call.1} parent=1 // pred_check
      _
    $region15: #{tpu_custom_call.1} parent=1 // pred_check_branch
      %37 = sbr.rel (0) target = $region17
    $region16: #{tpu_custom_call.1} parent=1 // pred_region
      %s39 = ssub.s32 2048, 2048
      %40 = vsyncadd [#allocation5], %s39
      %s41 = sshll.u32 [#allocation6], 4
      %s42 = int_to_ptr.vmem [resolvable:$true] %s41
      %47 = dma.hbm_to_vmem [thread:$0]  %s3, 2048, %s42, [#allocation5], 128, 128, 8
    $region17: #{tpu_custom_call.1} parent=1 // pred_fallthru
      _
    // Predicated region
    $region18: #{tpu_custom_call.1} parent=1 // pred_check
      _
    $region19: #{tpu_custom_call.1} parent=1 // pred_check_branch
      %49 = sbr.rel (0) target = $region21
    $region20: #{tpu_custom_call.1} parent=1 // pred_region
      _
    $region21: #{tpu_custom_call.1} parent=1 // pred_fallthru
      _
    // Predicated region
    $region22: #{tpu_custom_call.1} parent=1 // pred_check
      _
    $region23: #{tpu_custom_call.1} parent=1 // pred_check_branch
      %51 = sbr.rel (0) target = $region25
    $region24: #{tpu_custom_call.1} parent=1 // pred_region
      %52 = dma.done [#allocation3], 128
    $region25: #{tpu_custom_call.1} parent=1 // pred_fallthru
      _
    // Predicated region
    $region26: #{tpu_custom_call.1} parent=1 // pred_check
      _
    $region27: #{tpu_custom_call.1} parent=1 // pred_check_branch
      %54 = sbr.rel (0) target = $region29
    $region28: #{tpu_custom_call.1} parent=1 // pred_region
      %55 = dma.done [#allocation5], 256
    $region29: #{tpu_custom_call.1} parent=1 // pred_fallthru
      _
    // Predicated region
    $region30: #{tpu_custom_call.1} parent=1 // pred_check
      _
    $region31: #{tpu_custom_call.1} parent=1 // pred_check_branch
      %57 = sbr.rel (0) target = $region33
    $region32: #{tpu_custom_call.1} parent=1 // pred_region
      %58 = dma.done [#allocation5], 2048
    $region33: #{tpu_custom_call.1} parent=1 // pred_fallthru
      _
    %v59 = vld [vmem:[#allocation2] sm:$0xff]
    %v60 = vld [vmem:[#allocation4] sm:$0xff]
    %v61 = vld [vmem:[#allocation4 + $0x8] sm:$0x7]
    %v62 = vld [vmem:[%s2] sm:$0x1]
    %v64 = vlaneseq
    %v65 = vshrl.u32 %v64, 7
    %v66 = vsub.s32 0, %v65
    %v67 = vrot.slane %v62, %v66
    %vm69 = vcmask 89088
    %v71 = vsel %vm69, %v59, 0
    %vm73 = vcmask 1042432
    %v75 = vsel %vm73, %v61, 0
    %77 = vmatprep.subr.mxu0 0.0
    %78 = vmatpush1.msra.mxu0 %v60
    %79 = vmatprep.subr.mxu0 0.0
    %80 = vmatpush1.msra.mxu0 %v75
    %81 = vmatprep.subr.mxu0 0.0
    %82 = vmatpush1.msra.mxu0 0.0
    %83 = vmatprep.subr.mxu0 0.0
    %84 = vmatpush1.msra.mxu0 0.0
    %85 = vmatprep.subr.mxu0 0.0
    %86 = vmatpush1.msra.mxu0 0.0
    %87 = vmatprep.subr.mxu0 0.0
    %88 = vmatpush1.msra.mxu0 0.0
    %89 = vmatprep.subr.mxu0 0.0
    %90 = vmatpush1.msra.mxu0 0.0
    %91 = vmatprep.subr.mxu0 0.0
    %92 = vmatpush1.msra.mxu0 0.0
    %93 = vmatprep.subr.mxu0 0.0
    %94 = vmatpush1.msra.mxu0 0.0
    %95 = vmatprep.subr.mxu0 0.0
    %96 = vmatpush1.msra.mxu0 0.0
    %97 = vmatprep.subr.mxu0 0.0
    %98 = vmatpush1.msra.mxu0 0.0
    %99 = vmatprep.subr.mxu0 0.0
    %100 = vmatpush1.msra.mxu0 0.0
    %101 = vmatprep.subr.mxu0 0.0
    %102 = vmatpush1.msra.mxu0 0.0
    %103 = vmatprep.subr.mxu0 0.0
    %104 = vmatpush1.msra.mxu0 0.0
    %105 = vmatprep.subr.mxu0 0.0
    %106 = vmatpush1.msra.mxu0 0.0
    %107 = vmatprep.subr.mxu0 0.0
    %108 = vmatpush1.msra.mxu0 0.0
    %109 = vmatprep.subr.mxu0 0.0
    %110 = vmatpush1.msra.mxu0 0.0
    %111 = vmatprep.subr.mxu0 0.0
    %112 = vmatpush1.msra.mxu0 0.0
    %113 = vmatprep.subr.mxu0 0.0
    %114 = vmatpush1.msra.mxu0 0.0
    %115 = vmatprep.subr.mxu0 0.0
    %116 = vmatpush1.msra.mxu0 0.0
    %117 = vmatprep.subr.mxu0 0.0
    %118 = vmatpush1.msra.mxu0 0.0
    %119 = vmatprep.subr.mxu0 0.0
    %120 = vmatpush1.msra.mxu0 0.0
    %121 = vmatprep.subr.mxu0 0.0
    %122 = vmatpush1.msra.mxu0 0.0
    %123 = vmatprep.subr.mxu0 0.0
    %124 = vmatpush1.msra.mxu0 0.0
    %125 = vmatprep.subr.mxu0 0.0
    %126 = vmatpush1.msra.mxu0 0.0
    %127 = vmatprep.subr.mxu0 0.0
    %128 = vmatpush1.msra.mxu0 0.0
    %129 = vmatprep.subr.mxu0 0.0
    %130 = vmatpush1.msra.mxu0 0.0
    %131 = vmatprep.subr.mxu0 0.0
    %132 = vmatpush1.msra.mxu0 0.0
    %133 = vmatprep.subr.mxu0 0.0
    %134 = vmatpush1.msra.mxu0 0.0
    %135 = vmatprep.subr.mxu0 0.0
    %136 = vmatpush1.msra.mxu0 0.0
    %137 = vmatprep.subr.mxu0 0.0
    %138 = vmatpush1.msra.mxu0 0.0
    %139 = vmatprep.subr.mxu0 0.0
    %140 = vmatpush1.msra.mxu0 0.0
    %141 = vmatprep.mubr.f32.mxu0 0.0
    %142 = vmatmul.mubr.f32.gmra.mrb[0].mxu0 %v71
    %v143 = vpop.f32.mrb[0].mxu0
    %v144 = vadd.f32 %v67, %v143
    %v145 = vpop.f32.mrb[0].mxu0
    %146 = vdwg.mxu0
    %v147 = vmax.f32 %v144, 0.0
    %v148 = vld [vmem:[#allocation6] sm:$0xff]
    %v149 = vld [vmem:[#allocation6 + $0x8] sm:$0xff]
    %v150 = vld [vmem:[#allocation6 + $0x10] sm:$0xff]
    %v151 = vld [vmem:[#allocation6 + $0x18] sm:$0xff]
    %v152 = vld [vmem:[#allocation6 + $0x20] sm:$0xff]
    %v153 = vld [vmem:[#allocation6 + $0x28] sm:$0xff]
    %v154 = vld [vmem:[#allocation6 + $0x30] sm:$0xff]
    %v155 = vld [vmem:[#allocation6 + $0x38] sm:$0xff]
    %v156 = vld [vmem:[#allocation6 + $0x40] sm:$0xff]
    %v157 = vld [vmem:[#allocation6 + $0x48] sm:$0xff]
    %v158 = vld [vmem:[#allocation6 + $0x50] sm:$0xff]
    %v159 = vld [vmem:[#allocation6 + $0x58] sm:$0xff]
    %v160 = vld [vmem:[#allocation6 + $0x60] sm:$0xff]
    %v161 = vld [vmem:[#allocation6 + $0x68] sm:$0xff]
    %v162 = vld [vmem:[#allocation6 + $0x70] sm:$0xff]
    %v163 = vld [vmem:[#allocation6 + $0x78] sm:$0xff]
    %v164 = vld [vmem:[%s4] sm:$0x1]
    %v166 = vlaneseq
    %v167 = vshrl.u32 %v166, 7
    %v168 = vsub.s32 0, %v167
    %v169 = vrot.slane %v164, %v168
    %171 = vmatprep.subr.mxu0 0.0
    %172 = vmatpush1.msra.mxu0 %v148
    %173 = vmatprep.subr.mxu0 0.0
    %174 = vmatpush1.msra.mxu0 %v149
    %175 = vmatprep.subr.mxu0 0.0
    %176 = vmatpush1.msra.mxu0 %v150
    %177 = vmatprep.subr.mxu0 0.0
    %178 = vmatpush1.msra.mxu0 %v151
    %179 = vmatprep.subr.mxu0 0.0
    %180 = vmatpush1.msra.mxu0 %v152
    %181 = vmatprep.subr.mxu0 0.0
    %182 = vmatpush1.msra.mxu0 %v153
    %183 = vmatprep.subr.mxu0 0.0
    %184 = vmatpush1.msra.mxu0 %v154
    %185 = vmatprep.subr.mxu0 0.0
    %186 = vmatpush1.msra.mxu0 %v155
    %187 = vmatprep.subr.mxu0 0.0
    %188 = vmatpush1.msra.mxu0 %v156
    %189 = vmatprep.subr.mxu0 0.0
    %190 = vmatpush1.msra.mxu0 %v157
    %191 = vmatprep.subr.mxu0 0.0
    %192 = vmatpush1.msra.mxu0 %v158
    %193 = vmatprep.subr.mxu0 0.0
    %194 = vmatpush1.msra.mxu0 %v159
    %195 = vmatprep.subr.mxu0 0.0
    %196 = vmatpush1.msra.mxu0 %v160
    %197 = vmatprep.subr.mxu0 0.0
    %198 = vmatpush1.msra.mxu0 %v161
    %199 = vmatprep.subr.mxu0 0.0
    %200 = vmatpush1.msra.mxu0 %v162
    %201 = vmatprep.subr.mxu0 0.0
    %202 = vmatpush1.msra.mxu0 %v163
    %203 = vmatprep.subr.mxu0 0.0
    %204 = vmatpush1.msra.mxu0 0.0
    %205 = vmatprep.subr.mxu0 0.0
    %206 = vmatpush1.msra.mxu0 0.0
    %207 = vmatprep.subr.mxu0 0.0
    %208 = vmatpush1.msra.mxu0 0.0
    %209 = vmatprep.subr.mxu0 0.0
    %210 = vmatpush1.msra.mxu0 0.0
    %211 = vmatprep.subr.mxu0 0.0
    %212 = vmatpush1.msra.mxu0 0.0
    %213 = vmatprep.subr.mxu0 0.0
    %214 = vmatpush1.msra.mxu0 0.0
    %215 = vmatprep.subr.mxu0 0.0
    %216 = vmatpush1.msra.mxu0 0.0
    %217 = vmatprep.subr.mxu0 0.0
    %218 = vmatpush1.msra.mxu0 0.0
    %219 = vmatprep.subr.mxu0 0.0
    %220 = vmatpush1.msra.mxu0 0.0
    %221 = vmatprep.subr.mxu0 0.0
    %222 = vmatpush1.msra.mxu0 0.0
    %223 = vmatprep.subr.mxu0 0.0
    %224 = vmatpush1.msra.mxu0 0.0
    %225 = vmatprep.subr.mxu0 0.0
    %226 = vmatpush1.msra.mxu0 0.0
    %227 = vmatprep.subr.mxu0 0.0
    %228 = vmatpush1.msra.mxu0 0.0
    %229 = vmatprep.subr.mxu0 0.0
    %230 = vmatpush1.msra.mxu0 0.0
    %231 = vmatprep.subr.mxu0 0.0
    %232 = vmatpush1.msra.mxu0 0.0
    %233 = vmatprep.subr.mxu0 0.0
    %234 = vmatpush1.msra.mxu0 0.0
    %235 = vmatprep.mubr.f32.mxu0 0.0
    %236 = vmatmul.mubr.f32.gmra.mrb[0].mxu0 %v147
    %v237 = vpop.f32.mrb[0].mxu0
    %v238 = vadd.f32 %v169, %v237
    %v239 = vpop.f32.mrb[0].mxu0
    %240 = vdwg.mxu0
    %vm241 = vcmask 23552
    %242 = vst.msk [vmem:[%s5] sm:$0xff] %vm241, %v238
    // Predicated region
    $region34: #{tpu_custom_call.1} parent=1 // pred_check
      _
    $region35: #{tpu_custom_call.1} parent=1 // pred_check_branch
      %244 = sbr.rel (0) target = $region37
    $region36: #{tpu_custom_call.1} parent=1 // pred_region
      _
    $region37: #{tpu_custom_call.1} parent=1 // pred_fallthru
      _
    // Predicated region
    $region38: #{tpu_custom_call.1} parent=1 // pred_check
      _
    $region39: #{tpu_custom_call.1} parent=1 // pred_check_branch
      %246 = sbr.rel (0) target = $region41
    $region40: #{tpu_custom_call.1} parent=1 // pred_region
      _
    $region41: #{tpu_custom_call.1} parent=1 // pred_fallthru
      _
    %247 = vsyncpa [#allocation3], 1
    %248 = vsyncpa [#allocation5], 1

</llo_original>
